<compile_context>
chip_gen: v5e
topology: v5e:2x2
jax: 0.10.0
libtpu: 0.0.40
codegen_flags: <defaults>
</compile_context>

<pallas_src>
import functools

import jax
import jax.numpy as jnp
from jax.experimental import pallas as pl
from jax.experimental.pallas import tpu as pltpu


def _gcn_kernel(*refs, apply_relu, ax_first, featureless, use_scratch):
    if featureless:
        a_ref, w_ref, o_ref = refs[0], refs[1], refs[2]
        x_ref = None
    else:
        x_ref, a_ref, w_ref, o_ref = refs[0], refs[1], refs[2], refs[3]
    # Accumulate directly into the resident output block when it is f32;
    # otherwise use the trailing f32 VMEM scratch.
    acc_ref = refs[-1] if use_scratch else o_ref

    s = pl.program_id(1)
    n_sup = pl.num_programs(1)

    @pl.when(s == 0)
    def _():
        acc_ref[...] = jnp.zeros_like(acc_ref)

    if featureless:
        # pre_sup = W_s directly:  out_tile += A_tile @ W_s
        contrib = jnp.dot(a_ref[...], w_ref[...],
                          preferred_element_type=jnp.float32)
    elif ax_first:
        # d_in <= d_out:  (A_tile @ x) @ W_s  -- fewer MXU FLOPs
        ax = jnp.dot(a_ref[...], x_ref[...],
                     preferred_element_type=jnp.float32)
        contrib = jnp.dot(ax.astype(w_ref.dtype), w_ref[...],
                          preferred_element_type=jnp.float32)
    else:
        # d_in > d_out:  A_tile @ (x @ W_s)
        pre = jnp.dot(x_ref[...], w_ref[...],
                      preferred_element_type=jnp.float32)
        contrib = jnp.dot(a_ref[...], pre.astype(a_ref.dtype),
                          preferred_element_type=jnp.float32)

    acc_ref[...] += contrib.astype(acc_ref.dtype)

    if use_scratch or apply_relu:
        @pl.when(s == n_sup - 1)
        def _():
            result = acc_ref[...]
            if apply_relu:
                result = jnp.maximum(result, 0.0)
            o_ref[...] = result.astype(o_ref.dtype)


def _pick_row_tile(n, n_cols, itemsize, budget_bytes=8 << 20):
    """Largest TM dividing N (multiple of 8) whose support slab fits the budget."""
    for tm in (1024, 512, 256, 128, 64, 32, 16, 8):
        if tm <= n and n % tm == 0 and tm * n_cols * itemsize <= budget_bytes:
            return tm
    return n  # tiny / oddly-shaped N: single full-extent tile


def graph_convolution(x, support, weights, act_func=None, featureless=False,
                      compute_dtype=None, row_tile=None):
    """x: [N, D_in] (or None if featureless), support: [S, N, N],
    weights: [S, D_in, D_out].  compute_dtype=jnp.bfloat16 casts the MXU
    operands (accumulation stays f32)."""
    s_num, n, _ = support.shape
    d_in, d_out = weights.shape[-2], weights.shape[-1]
    out_dtype = x.dtype if x is not None else weights.dtype

    if featureless:
        assert d_in == n, "featureless GCN requires input_dim == num_nodes"

    if compute_dtype is not None:
        support = support.astype(compute_dtype)
        weights = weights.astype(compute_dtype)
        if x is not None:
            x = x.astype(compute_dtype)

    elt = jnp.dtype(support.dtype).itemsize
    tm = row_tile if row_tile is not None else _pick_row_tile(n, n, elt)

    apply_relu = (act_func == "relu")
    ax_first = (not featureless) and (d_in <= d_out)
    use_scratch = jnp.dtype(out_dtype) != jnp.dtype(jnp.float32)

    kernel = functools.partial(
        _gcn_kernel, apply_relu=apply_relu, ax_first=ax_first,
        featureless=featureless, use_scratch=use_scratch)

    # NOTE: d_out is the (full-extent) lane dim of the output block; keep it a
    # multiple of 128 in model configs to avoid masked partial stores.
    support_spec = pl.BlockSpec((pl.Squeezed(), tm, n), lambda i, s: (s, i, 0))
    w_spec = pl.BlockSpec((pl.Squeezed(), d_in, d_out), lambda i, s: (s, 0, 0))
    out_spec = pl.BlockSpec((tm, d_out), lambda i, s: (i, 0))

    if featureless:
        in_specs = [support_spec, w_spec]
        args = (support, weights)
    else:
        x_spec = pl.BlockSpec((n, d_in), lambda i, s: (0, 0))
        in_specs = [x_spec, support_spec, w_spec]
        args = (x, support, weights)

    scratch_shapes = (
        [pltpu.VMEM((tm, d_out), jnp.float32)] if use_scratch else [])

    # VMEM budget: double-buffered inputs + resident output (+ scratch).
    vmem_est = (2 * tm * n * elt
                + (0 if featureless else 2 * n * d_in * elt)
                + 2 * d_in * d_out * elt
                + 2 * tm * d_out * jnp.dtype(out_dtype).itemsize
                + (tm * d_out * 4 if use_scratch else 0))
    vmem_limit = int(min(max(vmem_est + (4 << 20), 32 << 20), 64 << 20))

    return pl.pallas_call(
        kernel,
        out_shape=jax.ShapeDtypeStruct((n, d_out), out_dtype),
        grid_spec=pltpu.PrefetchScalarGridSpec(
            num_scalar_prefetch=0,
            grid=(n // tm, s_num),        # (row tiles, supports)
            in_specs=in_specs,
            out_specs=out_spec,
            scratch_shapes=scratch_shapes,
        ),
        compiler_params=pltpu.CompilerParams(
            dimension_semantics=("parallel", "arbitrary"),
            vmem_limit_bytes=vmem_limit,
        ),
    )(*args)


if __name__ == "__main__":
    # Small, deterministic problem: N=64 nodes, D_in=32, D_out=128, 3 supports.
    key = jax.random.PRNGKey(0)
    k_x, k_a, k_w = jax.random.split(key, 3)

    N, D_IN, D_OUT, S = 64, 32, 128, 3

    x = jax.random.normal(k_x, (N, D_IN), dtype=jnp.float32)
    support = jax.random.normal(k_a, (S, N, N), dtype=jnp.float32)
    weights = jax.random.normal(k_w, (S, D_IN, D_OUT), dtype=jnp.float32)

    # act_func=None path
    out = jax.block_until_ready(graph_convolution(x, support, weights, act_func=None))

    ref = jnp.zeros((N, D_OUT), jnp.float32)
    for i in range(S):
        ref = ref + support[i] @ (x @ weights[i])

    assert out.shape == (N, D_OUT), out.shape
    assert jnp.allclose(out, ref, atol=1e-3, rtol=1e-3), \
        float(jnp.max(jnp.abs(out - ref)))

    # act_func=relu path
    out_relu = jax.block_until_ready(
        graph_convolution(x, support, weights, act_func="relu"))
    assert jnp.allclose(out_relu, jnp.maximum(ref, 0.0), atol=1e-3, rtol=1e-3)

    # featureless path (pre_sup = W_i directly, requires input_dim == N)
    w_fl = jax.random.normal(jax.random.PRNGKey(1), (S, N, D_OUT), dtype=jnp.float32)
    out_fl = jax.block_until_ready(
        graph_convolution(None, support, w_fl, featureless=True))
    ref_fl = jnp.zeros((N, D_OUT), jnp.float32)
    for i in range(S):
        ref_fl = ref_fl + support[i] @ w_fl[i]
    assert jnp.allclose(out_fl, ref_fl, atol=1e-3, rtol=1e-3)

    print("KERNEL_OK")
</pallas_src>

<mosaic_0001>
module attributes {stable_mosaic.version = 11 : i64} {
  func.func @_gcn_kernel(%arg0: i32, %arg1: i32, %arg2: memref<64x32xf32, #tpu.memory_space<vmem>>, %arg3: memref<1x64x64xf32, #tpu.memory_space<vmem>>, %arg4: memref<1x32x128xf32, #tpu.memory_space<vmem>>, %arg5: memref<64x128xf32, #tpu.memory_space<vmem>>) attributes {dimension_semantics = [#tpu.dimension_semantics<parallel>, #tpu.dimension_semantics<arbitrary>], iteration_bounds = array<i64: 1, 3>, scalar_prefetch = 0 : i64, scratch_operands = 0 : i64, tpu.core_type = #tpu.core_type<tc>, window_params = [{pipeline_mode = #tpu.pipeline_mode<synchronous>, transform_indices = @transform_0, window_bounds = array<i64: 64, 32>}, {transform_indices = @transform_1, window_bounds = array<i64: 1, 64, 64>}, {transform_indices = @transform_2, window_bounds = array<i64: 1, 32, 128>}, {transform_indices = @transform_3, window_bounds = array<i64: 64, 128>}]} {
    %c0_i32 = arith.constant 0 : i32
    %0 = arith.cmpi eq, %arg1, %c0_i32 : i32
    %1 = arith.extui %0 : i1 to i32
    %c0_i32_0 = arith.constant 0 : i32
    %2 = arith.cmpi ne, %1, %c0_i32_0 : i32
    scf.if %2 {
      %cst_13 = arith.constant 0.000000e+00 : f32
      %13 = vector.broadcast %cst_13 : f32 to vector<64x128xf32>
      %c0_14 = arith.constant 0 : index
      %c0_15 = arith.constant 0 : index
      %14 = vector.load %arg5[%c0_14, %c0_15] : memref<64x128xf32, #tpu.memory_space<vmem>>, vector<64x128xf32>
      tpu.vector_store %arg5[%c0_14, %c0_15], %13 {strides = array<i32>} : memref<64x128xf32, #tpu.memory_space<vmem>>, vector<64x128xf32>,
    } else {
    }
    %c0 = arith.constant 0 : index
    %c0_1 = arith.constant 0 : index
    %c0_2 = arith.constant 0 : index
    %3 = vector.load %arg3[%c0, %c0_1, %c0_2] : memref<1x64x64xf32, #tpu.memory_space<vmem>>, vector<1x64x64xf32>
    %4 = vector.shape_cast %3 : vector<1x64x64xf32> to vector<64x64xf32>
    %c0_3 = arith.constant 0 : index
    %c0_4 = arith.constant 0 : index
    %5 = vector.load %arg2[%c0_3, %c0_4] : memref<64x32xf32, #tpu.memory_space<vmem>>, vector<64x32xf32>
    %cst = arith.constant dense<0.000000e+00> : vector<64x32xf32>
    %6 = tpu.matmul %4, %5, %cst {dimension_numbers = #tpu.dot_dimension_numbers<[1], [0], [0], [1], [0, 0, 1, 1], [], []>} : vector<64x64xf32>, vector<64x32xf32>, vector<64x32xf32> -> vector<64x32xf32>
    %c0_5 = arith.constant 0 : index
    %c0_6 = arith.constant 0 : index
    %c0_7 = arith.constant 0 : index
    %7 = vector.load %arg4[%c0_5, %c0_6, %c0_7] : memref<1x32x128xf32, #tpu.memory_space<vmem>>, vector<1x32x128xf32>
    %8 = vector.shape_cast %7 : vector<1x32x128xf32> to vector<32x128xf32>
    %cst_8 = arith.constant dense<0.000000e+00> : vector<64x128xf32>
    %9 = tpu.matmul %6, %8, %cst_8 {dimension_numbers = #tpu.dot_dimension_numbers<[1], [0], [0], [1], [0, 0, 1, 1], [], []>} : vector<64x32xf32>, vector<32x128xf32>, vector<64x128xf32> -> vector<64x128xf32>
    %c0_9 = arith.constant 0 : index
    %c0_10 = arith.constant 0 : index
    %10 = vector.load %arg5[%c0_9, %c0_10] : memref<64x128xf32, #tpu.memory_space<vmem>>, vector<64x128xf32>
    %11 = arith.addf %10, %9 : vector<64x128xf32>
    %c0_11 = arith.constant 0 : index
    %c0_12 = arith.constant 0 : index
    %12 = vector.load %arg5[%c0_11, %c0_12] : memref<64x128xf32, #tpu.memory_space<vmem>>, vector<64x128xf32>
    tpu.vector_store %arg5[%c0_11, %c0_12], %11 {strides = array<i32>} : memref<64x128xf32, #tpu.memory_space<vmem>>, vector<64x128xf32>,
    return
  }
  func.func @transform_0(%arg0: i32, %arg1: i32) -> (i32, i32) {
    %c0_i32 = arith.constant 0 : i32
    %c0_i32_0 = arith.constant 0 : i32
    %c0_i32_1 = arith.constant 0 : i32
    return %c0_i32, %c0_i32_0 : i32, i32
  }
  func.func @transform_1(%arg0: i32, %arg1: i32) -> (i32, i32, i32) {
    %c0_i32 = arith.constant 0 : i32
    %c0_i32_0 = arith.constant 0 : i32
    return %arg1, %arg0, %c0_i32 : i32, i32, i32
  }
  func.func @transform_2(%arg0: i32, %arg1: i32) -> (i32, i32, i32) {
    %c0_i32 = arith.constant 0 : i32
    %c0_i32_0 = arith.constant 0 : i32
    %c0_i32_1 = arith.constant 0 : i32
    return %arg1, %c0_i32, %c0_i32_0 : i32, i32, i32
  }
  func.func @transform_3(%arg0: i32, %arg1: i32) -> (i32, i32) {
    %c0_i32 = arith.constant 0 : i32
    %c0_i32_0 = arith.constant 0 : i32
    return %arg0, %c0_i32 : i32, i32
  }
}

</mosaic_0001>

<llo_original>
// kernel: tpu_custom_call.1
$region0: #{tpu_custom_call.1}
  #allocation0 [shape = 'u32[]', space=smem, size = 0x4, offset = 0x4, fixed_abs, tag = 'smem constant byte address 0x4 - core index']
  #allocation1 [shape = 'u32[72,128]{1,0:T(1,128)}', space=vmem, size = 0x9000, scoped, tag = 'internal scratch']
  %s0 = inlined_call_operand.vmem [shape: f32[64,32], index: 0, kind: input, shape index: {}]
  %s1 = inlined_call_operand.hbm [shape: f32[3,64,64], index: 1, kind: input, shape index: {}]
  %s2 = inlined_call_operand.vmem [shape: f32[3,32,128], index: 2, kind: input, shape index: {}]
  %s3 = inlined_call_operand.hbm [shape: f32[64,128], index: 3, kind: output, shape index: {}]
  %s4 = sld [smem:[#allocation0]]
  $region53: #{tpu_custom_call.1} parent=0
    _
  %s6 = ssub.s32 1, %s4
  %s7 = scalar_select 0, %s6, %s4
  $region1: #{tpu_custom_call.1} parent=0
    #allocation2 [shape = 'u8[65536]{0}', space=vmem, size = 0x10000, scoped, tag = 'input window, operand 1']
    #allocation3 [shape = 's32[2]{0}', space=sflag, size = 0x8, scoped, tag = 'scoped memory for tpu_custom_call.1']
    #allocation4 [shape = 's32[2]{0}', space=sflag, size = 0x8, scoped, tag = 'scoped memory for tpu_custom_call.1']
    #allocation5 [shape = 'u8[32768]{0}', space=vmem, size = 0x8000, scoped, tag = 'output window, operand 0, single buffered']
    %8 = vsyncpa [#allocation3], 0
    %s9 = scalar_lea.sflag [#allocation3], 1
    %10 = vsyncpa %s9, 0
    %11 = vsyncpa [#allocation4], 0
    loop: start=0, step=1, limit=5
    $region2: #{tpu_custom_call.1} parent=1 // loop_pre_header
      _
    $region3: #{tpu_custom_call.1} parent=1 // loop_header
      %s13 = sphi 0, %s17
      %p14 = scmp.ge.s32.totalorder %s13, 5
      %s20 = sphi 0, %s32
      %s21 = sphi 0, %s28
      %s22 = sphi 0, %s20
      %s23 = sphi 0, %s21
      %s24 = sphi 0, %s22
      %s25 = sphi 0, %s23
      %s33 = sphi 0, %s33
      %s35 = sphi 0, %s33
      %s36 = sphi 0, %s35
      %s50 = sphi 0, %s36
      %s58 = sphi 0, %s60
      %s61 = sphi 0, %s58
      %s62 = sphi 0, %s61
      %s78 = sphi 0, %s62
      %s84 = sphi 0, %s86
      %s87 = sphi 0, %s84
      %s88 = sphi 0, %s87
      %s104 = sphi 0, %s88
      %s110 = sphi 0, %s112
      %s113 = sphi 0, %s110
      %s114 = sphi 0, %s113
      %s130 = sphi 0, %s114
    $region4: #{tpu_custom_call.1} parent=1 // loop_header_branch
      %16 = sbr.rel (%p14) target = $region8
    $region5: #{tpu_custom_call.1} parent=1 // loop_body
      %s18 = ssub.s32 %s13, 1
      %s19 = ssub.s32 %s13, 2
      %s26 = sadd.s32 1, %s21
      %p27 = scmp.ge.s32.totalorder %s26, 3
      %s28 = scalar_select %p27, 0, %s26
      %s29 = sadd.s32 1, %s20
      %s30 = scalar_select %p27, %s29, %s20
      %p31 = scmp.ge.s32.totalorder %s30, 1
      %s32 = scalar_select %p31, 0, %s30
      %s34 = sadd.s32 %s33, 1
      %p37 = scmp.eq.s32.totalorder %s13, 2
      %p38 = scmp.ne.s32.totalorder %s33, %s35
      %p39 = scmp.eq.s32.totalorder %s13, 0
      %p40 = por %p38, %p39
      %p41 = scmp.ne.s32.totalorder %s33, %s35
      %p42 = scmp.eq.s32.totalorder %s18, 2
      %p43 = por %p41, %p42
      %p44 = scmp.ne.s32.totalorder %s35, %s36
      %p45 = scmp.eq.s32.totalorder %s18, 0
      %p46 = por %p44, %p45
      %p47 = scmp.ne.s32.totalorder %s35, %s36
      %p48 = scmp.eq.s32.totalorder %s19, 2
      %p49 = por %p47, %p48
      %p51 = scmp.ne.s32.totalorder %s36, %s50
      %p52 = scmp.eq.s32.totalorder %s19, 0
      %p53 = por %p51, %p52
      %s54 = ssub.s32 %s21, %s28
      %s55 = ssub.s32 %s20, %s32
      %s56 = sor.u32 %s54, %s55
      %p57 = scmp.eq.s32.totalorder %s56, 0
      %s59 = sadd.s32 %s58, 1
      %s60 = scalar_select %p57, %s58, %s59
      %p63 = pneg %p57
      %p64 = scmp.eq.s32.totalorder %s13, 2
      %p65 = por %p63, %p64
      %p66 = scmp.ne.s32.totalorder %s58, %s61
      %p67 = scmp.eq.s32.totalorder %s13, 0
      %p68 = por %p66, %p67
      %p69 = scmp.ne.s32.totalorder %s58, %s61
      %p70 = scmp.eq.s32.totalorder %s18, 2
      %p71 = por %p69, %p70
      %p72 = scmp.ne.s32.totalorder %s61, %s62
      %p73 = scmp.eq.s32.totalorder %s18, 0
      %p74 = por %p72, %p73
      %p75 = scmp.ne.s32.totalorder %s61, %s62
      %p76 = scmp.eq.s32.totalorder %s19, 2
      %p77 = por %p75, %p76
      %p79 = scmp.ne.s32.totalorder %s62, %s78
      %p80 = scmp.eq.s32.totalorder %s19, 0
      %p81 = por %p79, %p80
      %s82 = ssub.s32 %s21, %s28
      %p83 = scmp.eq.s32.totalorder %s82, 0
      %s85 = sadd.s32 %s84, 1
      %s86 = scalar_select %p83, %s84, %s85
      %p89 = pneg %p83
      %p90 = scmp.eq.s32.totalorder %s13, 2
      %p91 = por %p89, %p90
      %p92 = scmp.ne.s32.totalorder %s84, %s87
      %p93 = scmp.eq.s32.totalorder %s13, 0
      %p94 = por %p92, %p93
      %p95 = scmp.ne.s32.totalorder %s84, %s87
      %p96 = scmp.eq.s32.totalorder %s18, 2
      %p97 = por %p95, %p96
      %p98 = scmp.ne.s32.totalorder %s87, %s88
      %p99 = scmp.eq.s32.totalorder %s18, 0
      %p100 = por %p98, %p99
      %p101 = scmp.ne.s32.totalorder %s87, %s88
      %p102 = scmp.eq.s32.totalorder %s19, 2
      %p103 = por %p101, %p102
      %p105 = scmp.ne.s32.totalorder %s88, %s104
      %p106 = scmp.eq.s32.totalorder %s19, 0
      %p107 = por %p105, %p106
      %s108 = ssub.s32 %s20, %s32
      %p109 = scmp.eq.s32.totalorder %s108, 0
      %s111 = sadd.s32 %s110, 1
      %s112 = scalar_select %p109, %s110, %s111
      %p115 = pneg %p109
      %p116 = scmp.eq.s32.totalorder %s13, 2
      %p117 = por %p115, %p116
      %p118 = scmp.ne.s32.totalorder %s110, %s113
      %p119 = scmp.eq.s32.totalorder %s13, 0
      %p120 = por %p118, %p119
      %p121 = scmp.ne.s32.totalorder %s110, %s113
      %p122 = scmp.eq.s32.totalorder %s18, 2
      %p123 = por %p121, %p122
      %p124 = scmp.ne.s32.totalorder %s113, %s114
      %p125 = scmp.eq.s32.totalorder %s18, 0
      %p126 = por %p124, %p125
      %p127 = scmp.ne.s32.totalorder %s113, %s114
      %p128 = scmp.eq.s32.totalorder %s19, 2
      %p129 = por %p127, %p128
      %p131 = scmp.ne.s32.totalorder %s114, %s130
      %p132 = scmp.eq.s32.totalorder %s19, 0
      %p133 = por %p131, %p132
      %p134 = scmp.le.s32.totalorder 1, %s13
      %p135 = scmp.lt.s32.totalorder %s13, 4
      %p136 = pnand %p134, %p135
      %p137 = pneg %p136
      // Predicated region
      $region9: #{tpu_custom_call.1} parent=5 // pred_check
        _
      $region10: #{tpu_custom_call.1} parent=5 // pred_check_branch
        %139 = sbr.rel (%p136) target = $region12
      $region11: #{tpu_custom_call.1} parent=5 // pred_region
        %s140 = ssub.s32 %s13, 1
        // Predicated region
        $region13: #{tpu_custom_call.1} parent=11 // pred_check
          %p141 = pneg %p46
        $region14: #{tpu_custom_call.1} parent=11 // pred_check_branch
          %143 = sbr.rel (%p141) target = $region16
        $region15: #{tpu_custom_call.1} parent=11 // pred_region
          _
        $region16: #{tpu_custom_call.1} parent=11 // pred_fallthru
          _
      $region12: #{tpu_custom_call.1} parent=5 // pred_fallthru
        _
      %p144 = scmp.lt.s32.totalorder %s13, 3
      // Predicated region
      $region17: #{tpu_custom_call.1} parent=5 // pred_check
        %p145 = pneg %p144
      $region18: #{tpu_custom_call.1} parent=5 // pred_check_branch
        %147 = sbr.rel (%p145) target = $region20
      $region19: #{tpu_custom_call.1} parent=5 // pred_region
        // Predicated region
        $region21: #{tpu_custom_call.1} parent=19 // pred_check
          %p148 = pneg %p68
        $region22: #{tpu_custom_call.1} parent=19 // pred_check_branch
          %150 = sbr.rel (%p148) target = $region24
        $region23: #{tpu_custom_call.1} parent=19 // pred_region
          %s151 = sand.u32 %s58, 1
          %s152 = scalar_lea.sflag [#allocation3], %s151
          %s153 = sand.u32 %s58, 1
          %s154 = smul.addr %s153, 64
          %s155 = scalar_lea.vmem [#allocation2], %s154
          %s156 = smul.u32 8, %s20
          %158 = vsyncadd %s152, 0
          %s159 = smul.addr %s21, 8
          %s160 = sadd.s32 %s156, %s159
          %s161 = smul.addr %s160, 8
          %s162 = scalar_lea.hbm %s1, %s161
          %s163 = sshll.u32 %s162, 4
          %s164 = int_to_ptr.hbm [resolvable:$true] %s163
          %s165 = sshll.u32 %s155, 4
          %s166 = int_to_ptr.vmem [resolvable:$true] %s165
          %171 = dma.hbm_to_vmem [thread:$0]  %s164, 1024, %s166, %s152, 128, 128, 8
        $region24: #{tpu_custom_call.1} parent=19 // pred_fallthru
          _
        // Predicated region
        $region25: #{tpu_custom_call.1} parent=19 // pred_check
          %p172 = pneg %p94
        $region26: #{tpu_custom_call.1} parent=19 // pred_check_branch
          %174 = sbr.rel (%p172) target = $region28
        $region27: #{tpu_custom_call.1} parent=19 // pred_region
          %p175 = scmp.lt.s32.totalorder %s21, 2
          %s176 = scalar_select %p175, %s21, 2
          %s177 = smul.addr %s176, 4
          %s178 = smul.addr %s177, 8
          %s179 = scalar_lea.vmem %s2, %s178
        $region28: #{tpu_custom_call.1} parent=19 // pred_fallthru
          _
      $region20: #{tpu_custom_call.1} parent=5 // pred_fallthru
        _
      %p180 = scmp.le.s32.totalorder 1, %s13
      %p181 = scmp.lt.s32.totalorder %s13, 4
      %p182 = pnand %p180, %p181
      %p183 = pneg %p182
      // Predicated region
      $region29: #{tpu_custom_call.1} parent=5 // pred_check
        _
      $region30: #{tpu_custom_call.1} parent=5 // pred_check_branch
        %185 = sbr.rel (%p182) target = $region32
      $region31: #{tpu_custom_call.1} parent=5 // pred_region
        %s186 = ssub.s32 %s13, 1
        %s187 = sand.u32 %s61, 1
        %s188 = scalar_lea.sflag [#allocation3], %s187
        %s189 = sand.u32 %s61, 1
        %s190 = smul.addr %s189, 64
        %s191 = scalar_lea.vmem [#allocation2], %s190
        // Predicated region
        $region33: #{tpu_custom_call.1} parent=31 // pred_check
          %p192 = pneg %p74
        $region34: #{tpu_custom_call.1} parent=31 // pred_check_branch
          %194 = sbr.rel (%p192) target = $region36
        $region35: #{tpu_custom_call.1} parent=31 // pred_region
          %196 = dma.done %s188, 1024
        $region36: #{tpu_custom_call.1} parent=31 // pred_fallthru
          _
        %p197 = pneg %p46
        %p198 = pneg %p43
        %s199 = sand.u32 %s61, 1
        %s200 = scalar_lea.sflag [#allocation3], %s199
        %s201 = sand.u32 %s61, 1
        %s202 = smul.addr %s201, 64
        %s203 = scalar_lea.vmem [#allocation2], %s202
        %p204 = pneg %p74
        %p205 = pneg %p71
        %p206 = scmp.lt.s32.totalorder %s23, 2
        %s207 = scalar_select %p206, %s23, 2
        %s208 = smul.addr %s207, 4
        %s209 = smul.addr %s208, 8
        %s210 = scalar_lea.vmem %s2, %s209
        %p211 = pneg %p100
        %p212 = pneg %p97
        %p213 = pneg %p126
        %p214 = pneg %p123
        %s215 = smul.u32 8, %s22
        %p216 = scmp.lt.s32.totalorder %s23, 2
        %s217 = scalar_select %p216, %s23, 2
        %s218 = smul.addr %s217, 4
        %s219 = smul.addr %s218, 8
        %s220 = scalar_lea.vmem %s2, %s219
        %s221 = smul.u32 8, %s22
        %p222 = scmp.eq.s32.totalorder %s23, 0
        // Predicated region
        $region37: #{tpu_custom_call.1} parent=31 // pred_check
          %p223 = pneg %p222
        $region38: #{tpu_custom_call.1} parent=31 // pred_check_branch
          %225 = sbr.rel (%p223) target = $region40
        $region39: #{tpu_custom_call.1} parent=31 // pred_region
          %226 = vst [vmem:[#allocation5] sm:$0xff] 0.0
          %227 = vst [vmem:[#allocation5 + $0x8] sm:$0xff] 0.0
          %228 = vst [vmem:[#allocation5 + $0x10] sm:$0xff] 0.0
          %229 = vst [vmem:[#allocation5 + $0x18] sm:$0xff] 0.0
          %230 = vst [vmem:[#allocation5 + $0x20] sm:$0xff] 0.0
          %231 = vst [vmem:[#allocation5 + $0x28] sm:$0xff] 0.0
          %232 = vst [vmem:[#allocation5 + $0x30] sm:$0xff] 0.0
          %233 = vst [vmem:[#allocation5 + $0x38] sm:$0xff] 0.0
        $region40: #{tpu_custom_call.1} parent=31 // pred_fallthru
          _
        %v234 = vld [vmem:[%s191] sm:$0xff]
        %v235 = vld [vmem:[%s191 + $0x8] sm:$0xff]
        %v236 = vld [vmem:[%s191 + $0x10] sm:$0xff]
        %v237 = vld [vmem:[%s191 + $0x18] sm:$0xff]
        %v238 = vld [vmem:[%s191 + $0x20] sm:$0xff]
        %v239 = vld [vmem:[%s191 + $0x28] sm:$0xff]
        %v240 = vld [vmem:[%s191 + $0x30] sm:$0xff]
        %v241 = vld [vmem:[%s191 + $0x38] sm:$0xff]
        %v242 = vld [vmem:[%s0] sm:$0xff]
        %v243 = vld [vmem:[%s0 + $0x8] sm:$0xff]
        %v244 = vld [vmem:[%s0 + $0x10] sm:$0xff]
        %v245 = vld [vmem:[%s0 + $0x18] sm:$0xff]
        %v246 = vld [vmem:[%s0 + $0x20] sm:$0xff]
        %v247 = vld [vmem:[%s0 + $0x28] sm:$0xff]
        %v248 = vld [vmem:[%s0 + $0x30] sm:$0xff]
        %v249 = vld [vmem:[%s0 + $0x38] sm:$0xff]
        %vm250 = vcmask 523264
        %v252 = vsel %vm250, %v234, 0
        %v255 = vsel %vm250, %v235, 0
        %v258 = vsel %vm250, %v236, 0
        %v261 = vsel %vm250, %v237, 0
        %v264 = vsel %vm250, %v238, 0
        %v267 = vsel %vm250, %v239, 0
        %v270 = vsel %vm250, %v240, 0
        %v273 = vsel %vm250, %v241, 0
        %275 = vmatpush.msra.mxu0 0.0
        %276 = vmatpush.msra.mxu0 0.0
        %277 = vmatpush.msra.mxu0 0.0
        %278 = vmatpush.msra.mxu0 0.0
        %279 = vmatpush.msra.mxu0 0.0
        %280 = vmatpush.msra.mxu0 0.0
        %281 = vmatpush.msra.mxu0 0.0
        %282 = vmatpush.msra.mxu0 0.0
        %283 = vmatpush.msra.mxu0 %v249
        %284 = vmatpush.msra.mxu0 %v248
        %285 = vmatpush.msra.mxu0 %v247
        %286 = vmatpush.msra.mxu0 %v246
        %287 = vmatpush.msra.mxu0 %v245
        %288 = vmatpush.msra.mxu0 %v244
        %289 = vmatpush.msra.mxu0 %v243
        %290 = vmatpush.msra.mxu0 %v242
        %291 = vmatmul.f32.gmra.mxu0 %v252
        %v292 = vpop.f32.mrf.mxu0
        %v293 = vadd.f32 0.0, %v292
        %294 = vmatmul.f32.gmra.mxu0 %v255
        %v295 = vpop.f32.mrf.mxu0
        %v296 = vadd.f32 0.0, %v295
        %297 = vmatmul.f32.gmra.mxu0 %v258
        %v298 = vpop.f32.mrf.mxu0
        %v299 = vadd.f32 0.0, %v298
        %300 = vmatmul.f32.gmra.mxu0 %v261
        %v301 = vpop.f32.mrf.mxu0
        %v302 = vadd.f32 0.0, %v301
        %303 = vmatmul.f32.gmra.mxu0 %v264
        %v304 = vpop.f32.mrf.mxu0
        %v305 = vadd.f32 0.0, %v304
        %306 = vmatmul.f32.gmra.mxu0 %v267
        %v307 = vpop.f32.mrf.mxu0
        %v308 = vadd.f32 0.0, %v307
        %309 = vmatmul.f32.gmra.mxu0 %v270
        %v310 = vpop.f32.mrf.mxu0
        %v311 = vadd.f32 0.0, %v310
        %312 = vmatmul.f32.gmra.mxu0 %v273
        %v313 = vpop.f32.mrf.mxu0
        %v314 = vadd.f32 0.0, %v313
        %315 = vdwg.mxu0
        %v316 = vld [vmem:[%s220] sm:$0xff]
        %v317 = vld [vmem:[%s220 + $0x8] sm:$0xff]
        %v318 = vld [vmem:[%s220 + $0x10] sm:$0xff]
        %v319 = vld [vmem:[%s220 + $0x18] sm:$0xff]
        %vm320 = vcmask 261120
        %v322 = vsel %vm320, %v293, 0
        %v325 = vsel %vm320, %v296, 0
        %v328 = vsel %vm320, %v299, 0
        %v331 = vsel %vm320, %v302, 0
        %v334 = vsel %vm320, %v305, 0
        %v337 = vsel %vm320, %v308, 0
        %v340 = vsel %vm320, %v311, 0
        %v343 = vsel %vm320, %v314, 0
        %345 = vmatpush.msra.mxu0 0.0
        %346 = vmatpush.msra.mxu0 0.0
        %347 = vmatpush.msra.mxu0 0.0
        %348 = vmatpush.msra.mxu0 0.0
        %349 = vmatpush.msra.mxu0 0.0
        %350 = vmatpush.msra.mxu0 0.0
        %351 = vmatpush.msra.mxu0 0.0
        %352 = vmatpush.msra.mxu0 0.0
        %353 = vmatpush.msra.mxu0 0.0
        %354 = vmatpush.msra.mxu0 0.0
        %355 = vmatpush.msra.mxu0 0.0
        %356 = vmatpush.msra.mxu0 0.0
        %357 = vmatpush.msra.mxu0 %v319
        %358 = vmatpush.msra.mxu0 %v318
        %359 = vmatpush.msra.mxu0 %v317
        %360 = vmatpush.msra.mxu0 %v316
        %361 = vmatmul.f32.gmra.mxu0 %v322
        %v362 = vpop.f32.mrf.mxu0
        %v363 = vadd.f32 0.0, %v362
        %364 = vmatmul.f32.gmra.mxu0 %v325
        %v365 = vpop.f32.mrf.mxu0
        %v366 = vadd.f32 0.0, %v365
        %367 = vmatmul.f32.gmra.mxu0 %v328
        %v368 = vpop.f32.mrf.mxu0
        %v369 = vadd.f32 0.0, %v368
        %370 = vmatmul.f32.gmra.mxu0 %v331
        %v371 = vpop.f32.mrf.mxu0
        %v372 = vadd.f32 0.0, %v371
        %373 = vmatmul.f32.gmra.mxu0 %v334
        %v374 = vpop.f32.mrf.mxu0
        %v375 = vadd.f32 0.0, %v374
        %376 = vmatmul.f32.gmra.mxu0 %v337
        %v377 = vpop.f32.mrf.mxu0
        %v378 = vadd.f32 0.0, %v377
        %379 = vmatmul.f32.gmra.mxu0 %v340
        %v380 = vpop.f32.mrf.mxu0
        %v381 = vadd.f32 0.0, %v380
        %382 = vmatmul.f32.gmra.mxu0 %v343
        %v383 = vpop.f32.mrf.mxu0
        %v384 = vadd.f32 0.0, %v383
        %385 = vdwg.mxu0
        %v386 = vld [vmem:[#allocation5] sm:$0xff]
        %v387 = vld [vmem:[#allocation5 + $0x8] sm:$0xff]
        %v388 = vld [vmem:[#allocation5 + $0x10] sm:$0xff]
        %v389 = vld [vmem:[#allocation5 + $0x18] sm:$0xff]
        %v390 = vld [vmem:[#allocation5 + $0x20] sm:$0xff]
        %v391 = vld [vmem:[#allocation5 + $0x28] sm:$0xff]
        %v392 = vld [vmem:[#allocation5 + $0x30] sm:$0xff]
        %v393 = vld [vmem:[#allocation5 + $0x38] sm:$0xff]
        %v394 = vadd.f32 %v386, %v363
        %v395 = vadd.f32 %v387, %v366
        %v396 = vadd.f32 %v388, %v369
        %v397 = vadd.f32 %v389, %v372
        %v398 = vadd.f32 %v390, %v375
        %v399 = vadd.f32 %v391, %v378
        %v400 = vadd.f32 %v392, %v381
        %v401 = vadd.f32 %v393, %v384
        %402 = vst [vmem:[#allocation5] sm:$0xff] %v394
        %403 = vst [vmem:[#allocation5 + $0x8] sm:$0xff] %v395
        %404 = vst [vmem:[#allocation5 + $0x10] sm:$0xff] %v396
        %405 = vst [vmem:[#allocation5 + $0x18] sm:$0xff] %v397
        %406 = vst [vmem:[#allocation5 + $0x20] sm:$0xff] %v398
        %407 = vst [vmem:[#allocation5 + $0x28] sm:$0xff] %v399
        %408 = vst [vmem:[#allocation5 + $0x30] sm:$0xff] %v400
        %409 = vst [vmem:[#allocation5 + $0x38] sm:$0xff] %v401
        // Predicated region
        $region41: #{tpu_custom_call.1} parent=31 // pred_check
          %p410 = pneg %p123
        $region42: #{tpu_custom_call.1} parent=31 // pred_check_branch
          %412 = sbr.rel (%p410) target = $region44
        $region43: #{tpu_custom_call.1} parent=31 // pred_region
          %s413 = smul.u32 8, %s22
          %415 = vsyncadd [#allocation4], 0
          %s416 = smul.addr %s413, 8
          %s417 = scalar_lea.hbm %s3, %s416
          %s418 = sshll.u32 [#allocation5], 4
          %s419 = int_to_ptr.vmem [resolvable:$true] %s418
          %s420 = sshll.u32 %s417, 4
          %s421 = int_to_ptr.hbm [resolvable:$true] %s420
          %426 = dma.vmem_to_hbm [thread:$0]  %s419, 1024, %s421, [#allocation4], 128, 128, 8
        $region44: #{tpu_custom_call.1} parent=31 // pred_fallthru
          _
        // Predicated region
        $region45: #{tpu_custom_call.1} parent=31 // pred_check
          %p427 = pneg %p123
        $region46: #{tpu_custom_call.1} parent=31 // pred_check_branch
          %429 = sbr.rel (%p427) target = $region48
        $region47: #{tpu_custom_call.1} parent=31 // pred_region
          %431 = dma.done [#allocation4], 1024
        $region48: #{tpu_custom_call.1} parent=31 // pred_fallthru
          _
      $region32: #{tpu_custom_call.1} parent=5 // pred_fallthru
        _
      %p432 = scmp.le.s32.totalorder 2, %s13
      // Predicated region
      $region49: #{tpu_custom_call.1} parent=5 // pred_check
        %p433 = pneg %p432
      $region50: #{tpu_custom_call.1} parent=5 // pred_check_branch
        %435 = sbr.rel (%p433) target = $region52
      $region51: #{tpu_custom_call.1} parent=5 // pred_region
        %s436 = ssub.s32 %s13, 2
      $region52: #{tpu_custom_call.1} parent=5 // pred_fallthru
        _
    $region6: #{tpu_custom_call.1} parent=1 // loop_footer
      %s17 = sadd.s32 1, %s13
    $region7: #{tpu_custom_call.1} parent=1 // loop_footer_branch
      %12 = sbr.rel target = $region3
    $region8: #{tpu_custom_call.1} parent=1 // loop_exit
      _
    %437 = vsyncpa [#allocation3], 1
    %s438 = scalar_lea.sflag [#allocation3], 1
    %439 = vsyncpa %s438, 1
    %440 = vsyncpa [#allocation4], 1
    %s441 = scalar_lea.sflag [#allocation4], 1
    %442 = vsyncpa %s441, 1

</llo_original>
